<compile_context>
chip_gen: v6e
topology: v6e:2x2x1
jax: 0.10.0
libtpu: 0.0.40
codegen_flags: <defaults>
</compile_context>

<pallas_src>
import functools
import math

import jax
import jax.numpy as jnp
from jax.experimental import pallas as pl
from jax.experimental.pallas import tpu as pltpu


def _cdiv(a, b):
    return (a + b - 1) // b


def _round_up(a, b):
    return _cdiv(a, b) * b


def _pick_batch_tile(B, max_tile=512):
    # Small batches: one tile (grid over feature blocks may still exist).
    if B < 256:
        return _round_up(max(B, 1), 8)
    # Guarantee >= 2 batch tiles so both v7x TensorCores get work; tiles up to
    # 512 rows amortise the ~0.35us/grid-step overhead on v5e/v6e and stay far
    # under VMEM after the contracting-block-diag rewrite.
    n_tiles = max(2, _cdiv(B, max_tile))
    return _round_up(_cdiv(B, n_tiles), 128)


def _autodis_kernel(x_ref, w1e_ref, w2b_ref, w3b_ref, o_ref, *, fb, m):
    # x_ref:   (TB, F_pad)       w1e_ref: (F_pad, Fb*M)
    # w2b_ref: (Fb*M, Fb*M)      w3b_ref: (Fb*M, FbDp)      o_ref: (TB, FbDp)
    x = x_ref[...].astype(w1e_ref.dtype)                       # bf16 MXU operand

    # Layer 1 (tokenizer, no bias) as one MXU contraction with the expanded
    # block-diagonal weight: h[b, l*M + j] = x[b, g*Fb + l] * w1[g*Fb + l, j].
    h = jnp.dot(x, w1e_ref[...], preferred_element_type=jnp.float32)   # [TB, FbM] f32

    # LeakyReLU(0.01) on the full lane-dense slab (VPU).
    h = jnp.where(h >= 0, h, jnp.float32(0.01) * h)

    # Layer 2 (1/temperature already folded into the block-diagonal weight).
    logits = jnp.dot(h.astype(w2b_ref.dtype), w2b_ref[...],
                     preferred_element_type=jnp.float32)               # [TB, FbM] f32

    # Segmented softmax over each feature's M-wide lane group: reductions and
    # their broadcasts are per-segment (static lane slices), the exp and the
    # normalization run on the full lane-dense slab.
    tb = logits.shape[0]
    seg_max = [jnp.max(logits[:, i * m:(i + 1) * m], axis=-1, keepdims=True)
               for i in range(fb)]
    row_max = jnp.concatenate(
        [jnp.broadcast_to(v, (tb, m)) for v in seg_max], axis=-1)       # [TB, FbM]
    e = jnp.exp(logits - row_max)                                       # f32 (EUP)
    seg_sum = [jnp.sum(e[:, i * m:(i + 1) * m], axis=-1, keepdims=True)
               for i in range(fb)]
    denom = jnp.concatenate(
        [jnp.broadcast_to(v, (tb, m)) for v in seg_sum], axis=-1)       # [TB, FbM]
    # Approximate reciprocal goes to the (otherwise idle) EUP slot; ~1e-3 rel
    # error. Use approx=False if bit-closer parity with PyTorch is required.
    p = e * pl.reciprocal(denom, approx=True)

    # Layer 3: block-diagonal contraction; the MXU performs the per-feature
    # reduction and the result is a lane-dense (multiple-of-128) output slab.
    out = jnp.dot(p.astype(w3b_ref.dtype), w3b_ref[...],
                  preferred_element_type=jnp.float32)                   # [TB, FbDp]
    o_ref[...] = out.astype(o_ref.dtype)


def prepare_autodis_params(w1, w2, w3, temperature, *, matmul_dtype=jnp.bfloat16):
    """Build static block-diagonal weights ONCE (model-init time).

    w1: [F, M]  w2: [F, M, M]  w3: [F, M, D]
    """
    F, M = w1.shape
    D = w3.shape[-1]

    # Up to 128 // D features per block, so each block's output is one full
    # 128-lane group and the layer-2/3 contraction depth is Fb*M (256 for M=16).
    Fb = min(F, max(1, 128 // D))
    nfb = _cdiv(F, Fb)
    F_pad = nfb * Fb
    FbM = Fb * M
    FbD = Fb * D
    FbDp = _round_up(FbD, 128)

    f32 = jnp.float32
    w1p = jnp.zeros((F_pad, M), f32).at[:F].set(w1.astype(f32))
    w2p = jnp.zeros((F_pad, M, M), f32).at[:F].set(w2.astype(f32))
    w3p = jnp.zeros((F_pad, M, D), f32).at[:F].set(w3.astype(f32))

    eye_l = jnp.eye(Fb, dtype=f32)

    # place[g, f, l] = 1 iff global feature f is local feature l of block g.
    f_idx = jnp.arange(F_pad)
    place = (f_idx[None, :, None] ==
             (jnp.arange(nfb)[:, None, None] * Fb +
              jnp.arange(Fb)[None, None, :])).astype(f32)               # [nfb, F_pad, Fb]

    # Layer-1 expanded weight: [nfb, F_pad, Fb*M].
    w1_blk = w1p.reshape(nfb, Fb, M)
    w1_exp = jnp.einsum("gfl,glm->gflm", place, w1_blk).reshape(nfb, F_pad, FbM)

    # Layer-2 block-diagonal weight with 1/temperature folded in: [nfb, FbM, FbM].
    w2_blk = jnp.einsum(
        "lp,glmk->glmpk", eye_l,
        w2p.reshape(nfb, Fb, M, M) / jnp.float32(temperature)).reshape(nfb, FbM, FbM)

    # Layer-3 block-diagonal weight, output lanes padded to 128: [nfb, FbM, FbDp].
    w3_blk = jnp.einsum("lp,glmd->glmpd", eye_l,
                        w3p.reshape(nfb, Fb, M, D)).reshape(nfb, FbM, FbD)
    w3_blk = jnp.pad(w3_blk, ((0, 0), (0, 0), (0, FbDp - FbD)))

    # Cast AFTER construction so the zero blocks stay exactly zero in bf16.
    return dict(
        w1_exp=w1_exp.astype(matmul_dtype),
        w2_blk=w2_blk.astype(matmul_dtype),
        w3_blk=w3_blk.astype(matmul_dtype),
        F=F, M=M, D=D, Fb=Fb, nfb=nfb, F_pad=F_pad, FbM=FbM, FbD=FbD, FbDp=FbDp,
    )


def autodis_forward(x, params, *, max_batch_tile=512):
    """x: [B, F] -> [B, F, D]."""
    B = x.shape[0]
    F, M, D = params["F"], params["M"], params["D"]
    Fb, nfb = params["Fb"], params["nfb"]
    F_pad, FbM = params["F_pad"], params["FbM"]
    FbD, FbDp = params["FbD"], params["FbDp"]
    assert x.shape[1] == F

    tb = _pick_batch_tile(B, max_batch_tile)
    b_pad = _round_up(B, tb)
    nb = b_pad // tb

    xp = x.astype(jnp.float32)
    if b_pad != B or F_pad != F:
        xp = jnp.pad(xp, ((0, b_pad - B), (0, F_pad - F)))

    kernel = functools.partial(_autodis_kernel, fb=Fb, m=M)

    out = pl.pallas_call(
        kernel,
        out_shape=jax.ShapeDtypeStruct((b_pad, nfb * FbDp), jnp.float32),
        # Feature-block axis outer so each block's weights stay resident while
        # batch tiles stream; both axes are independent -> "parallel".
        grid=(nfb, nb),
        in_specs=[
            pl.BlockSpec((tb, F_pad), lambda g, b: (b, 0)),          # x batch tile
            pl.BlockSpec((None, F_pad, FbM), lambda g, b: (g, 0, 0)),  # W1 block
            pl.BlockSpec((None, FbM, FbM), lambda g, b: (g, 0, 0)),    # W2 block
            pl.BlockSpec((None, FbM, FbDp), lambda g, b: (g, 0, 0)),   # W3 block
        ],
        out_specs=pl.BlockSpec((tb, FbDp), lambda g, b: (b, g)),
        compiler_params=pltpu.CompilerParams(
            dimension_semantics=("parallel", "parallel"),
            vmem_limit_bytes=32 * 1024 * 1024,  # safe on v5e/v6e (128 MiB) and v7x (64 MiB)
        ),
    )(xp, params["w1_exp"], params["w2_blk"], params["w3_blk"])

    # Strip lane padding / feature padding; row-major reshapes are free.
    out = out.reshape(b_pad, nfb, FbDp)[:B, :, :FbD]
    out = out.reshape(B, nfb, Fb, D).reshape(B, F_pad, D)[:, :F, :]
    return out


def autodis_reference(x, w1, w2, w3, temperature):
    h = x[..., None] * w1[None]                              # [B, F, M]
    h = jnp.where(h >= 0, h, 0.01 * h)
    h2 = jnp.einsum("bfm,fmk->bfk", h, w2)
    p = jax.nn.softmax(h2 / temperature, axis=-1)
    return jnp.einsum("bfm,fmd->bfd", p, w3)


if __name__ == "__main__":
    # Small shapes consistent with AutoDis: batch=8, n_features=4,
    # n_meta_embeddings=16, d_embedding=8, temperature=3.0
    B, F, M, D = 8, 4, 16, 8
    temperature = 3.0

    key = jax.random.PRNGKey(0)
    kx, k1, k2, k3 = jax.random.split(key, 4)

    x = jax.random.normal(kx, (B, F), dtype=jnp.float32)

    # NumericalFeatureTokenizer 'uniform' init: U(-1/sqrt(M), 1/sqrt(M))
    bound1 = 1.0 / math.sqrt(M)
    w1 = jax.random.uniform(k1, (F, M), jnp.float32, -bound1, bound1)

    # NLinear init ~ nn.Linear default: U(-1/sqrt(d_in), 1/sqrt(d_in))
    w2 = jax.random.uniform(k2, (F, M, M), jnp.float32, -bound1, bound1)

    # third_layer weight: nn.init.uniform_(w, 0.01) -> U(0.01, 1.0)
    w3 = jax.random.uniform(k3, (F, M, D), jnp.float32, 0.01, 1.0)

    # Static block-diagonal weights are built once (model-init time).
    params = prepare_autodis_params(w1, w2, w3, temperature)

    out = autodis_forward(x, params)
    out = jax.block_until_ready(out)

    ref = autodis_reference(x, w1, w2, w3, temperature)
    assert out.shape == (B, F, D)
    # Tolerance absorbs bf16 matmul operands and the approximate (EUP)
    # reciprocal in the softmax denominator.
    assert jnp.allclose(out, ref, atol=2e-2, rtol=2e-2), float(
        jnp.max(jnp.abs(out - ref)))

    print("KERNEL_OK")
</pallas_src>

<mosaic_0001>
module attributes {stable_mosaic.version = 11 : i64} {
  func.func @_autodis_kernel(%arg0: i32, %arg1: i32, %arg2: memref<8x4xf32, #tpu.memory_space<vmem>>, %arg3: memref<1x4x64xbf16, #tpu.memory_space<vmem>>, %arg4: memref<1x64x64xbf16, #tpu.memory_space<vmem>>, %arg5: memref<1x64x128xbf16, #tpu.memory_space<vmem>>, %arg6: memref<8x128xf32, #tpu.memory_space<vmem>>) attributes {dimension_semantics = [#tpu.dimension_semantics<parallel>, #tpu.dimension_semantics<parallel>], iteration_bounds = array<i64: 1, 1>, scalar_prefetch = 0 : i64, scratch_operands = 0 : i64, tpu.core_type = #tpu.core_type<tc>, window_params = [{transform_indices = @transform_0, window_bounds = array<i64: 8, 4>}, {transform_indices = @transform_1, window_bounds = array<i64: 1, 4, 64>}, {transform_indices = @transform_2, window_bounds = array<i64: 1, 64, 64>}, {transform_indices = @transform_3, window_bounds = array<i64: 1, 64, 128>}, {transform_indices = @transform_4, window_bounds = array<i64: 8, 128>}]} {
    %c0 = arith.constant 0 : index
    %c0_0 = arith.constant 0 : index
    %0 = vector.load %arg2[%c0, %c0_0] : memref<8x4xf32, #tpu.memory_space<vmem>>, vector<8x4xf32>
    %1 = arith.truncf %0 : vector<8x4xf32> to vector<8x4xbf16>
    %c0_1 = arith.constant 0 : index
    %c0_2 = arith.constant 0 : index
    %c0_3 = arith.constant 0 : index
    %2 = vector.load %arg3[%c0_1, %c0_2, %c0_3] : memref<1x4x64xbf16, #tpu.memory_space<vmem>>, vector<1x4x64xbf16>
    %3 = vector.shape_cast %2 : vector<1x4x64xbf16> to vector<4x64xbf16>
    %cst = arith.constant dense<0.000000e+00> : vector<8x64xf32>
    %4 = tpu.matmul %1, %3, %cst {dimension_numbers = #tpu.dot_dimension_numbers<[1], [0], [0], [1], [0, 0, 1, 1], [], []>} : vector<8x4xbf16>, vector<4x64xbf16>, vector<8x64xf32> -> vector<8x64xf32>
    %cst_4 = arith.constant 0.000000e+00 : f32
    %5 = vector.broadcast %cst_4 : f32 to vector<8x64xf32>
    %6 = arith.cmpf oge, %4, %5 : vector<8x64xf32>
    %cst_5 = arith.constant 0.00999999977 : f32
    %7 = vector.broadcast %cst_5 : f32 to vector<8x64xf32>
    %8 = arith.mulf %7, %4 : vector<8x64xf32>
    %9 = arith.select %6, %4, %8 : vector<8x64xi1>, vector<8x64xf32>
    %10 = arith.truncf %9 : vector<8x64xf32> to vector<8x64xbf16>
    %c0_6 = arith.constant 0 : index
    %c0_7 = arith.constant 0 : index
    %c0_8 = arith.constant 0 : index
    %11 = vector.load %arg4[%c0_6, %c0_7, %c0_8] : memref<1x64x64xbf16, #tpu.memory_space<vmem>>, vector<1x64x64xbf16>
    %12 = vector.shape_cast %11 : vector<1x64x64xbf16> to vector<64x64xbf16>
    %cst_9 = arith.constant dense<0.000000e+00> : vector<8x64xf32>
    %13 = tpu.matmul %10, %12, %cst_9 {dimension_numbers = #tpu.dot_dimension_numbers<[1], [0], [0], [1], [0, 0, 1, 1], [], []>} : vector<8x64xbf16>, vector<64x64xbf16>, vector<8x64xf32> -> vector<8x64xf32>
    %14 = vector.extract_strided_slice %13 {offsets = [0, 0], sizes = [8, 16], strides = [1, 1]} : vector<8x64xf32> to vector<8x16xf32>
    %cst_10 = arith.constant dense<0xFF800000> : vector<8xf32>
    %15 = vector.multi_reduction <maximumf>, %14, %cst_10 [1] : vector<8x16xf32> to vector<8xf32>
    %16 = vector.shape_cast %15 : vector<8xf32> to vector<8x1xf32>
    %17 = vector.extract_strided_slice %13 {offsets = [0, 16], sizes = [8, 16], strides = [1, 1]} : vector<8x64xf32> to vector<8x16xf32>
    %cst_11 = arith.constant dense<0xFF800000> : vector<8xf32>
    %18 = vector.multi_reduction <maximumf>, %17, %cst_11 [1] : vector<8x16xf32> to vector<8xf32>
    %19 = vector.shape_cast %18 : vector<8xf32> to vector<8x1xf32>
    %20 = vector.extract_strided_slice %13 {offsets = [0, 32], sizes = [8, 16], strides = [1, 1]} : vector<8x64xf32> to vector<8x16xf32>
    %cst_12 = arith.constant dense<0xFF800000> : vector<8xf32>
    %21 = vector.multi_reduction <maximumf>, %20, %cst_12 [1] : vector<8x16xf32> to vector<8xf32>
    %22 = vector.shape_cast %21 : vector<8xf32> to vector<8x1xf32>
    %23 = vector.extract_strided_slice %13 {offsets = [0, 48], sizes = [8, 16], strides = [1, 1]} : vector<8x64xf32> to vector<8x16xf32>
    %cst_13 = arith.constant dense<0xFF800000> : vector<8xf32>
    %24 = vector.multi_reduction <maximumf>, %23, %cst_13 [1] : vector<8x16xf32> to vector<8xf32>
    %25 = vector.shape_cast %24 : vector<8xf32> to vector<8x1xf32>
    %26 = vector.shape_cast %16 : vector<8x1xf32> to vector<8x1xf32>
    %27 = vector.broadcast %26 : vector<8x1xf32> to vector<8x16xf32>
    %28 = vector.shape_cast %19 : vector<8x1xf32> to vector<8x1xf32>
    %29 = vector.broadcast %28 : vector<8x1xf32> to vector<8x16xf32>
    %30 = vector.shape_cast %22 : vector<8x1xf32> to vector<8x1xf32>
    %31 = vector.broadcast %30 : vector<8x1xf32> to vector<8x16xf32>
    %32 = vector.shape_cast %25 : vector<8x1xf32> to vector<8x1xf32>
    %33 = vector.broadcast %32 : vector<8x1xf32> to vector<8x16xf32>
    %34 = tpu.concatenate %27, %29, %31, %33 in 1 : vector<8x16xf32>, vector<8x16xf32>, vector<8x16xf32>, vector<8x16xf32> -> vector<8x64xf32>
    %35 = arith.subf %13, %34 : vector<8x64xf32>
    %36 = math.exp %35 : vector<8x64xf32>
    %37 = vector.extract_strided_slice %36 {offsets = [0, 0], sizes = [8, 16], strides = [1, 1]} : vector<8x64xf32> to vector<8x16xf32>
    %cst_14 = arith.constant dense<0.000000e+00> : vector<8xf32>
    %38 = vector.multi_reduction <add>, %37, %cst_14 [1] : vector<8x16xf32> to vector<8xf32>
    %39 = vector.shape_cast %38 : vector<8xf32> to vector<8x1xf32>
    %40 = vector.extract_strided_slice %36 {offsets = [0, 16], sizes = [8, 16], strides = [1, 1]} : vector<8x64xf32> to vector<8x16xf32>
    %cst_15 = arith.constant dense<0.000000e+00> : vector<8xf32>
    %41 = vector.multi_reduction <add>, %40, %cst_15 [1] : vector<8x16xf32> to vector<8xf32>
    %42 = vector.shape_cast %41 : vector<8xf32> to vector<8x1xf32>
    %43 = vector.extract_strided_slice %36 {offsets = [0, 32], sizes = [8, 16], strides = [1, 1]} : vector<8x64xf32> to vector<8x16xf32>
    %cst_16 = arith.constant dense<0.000000e+00> : vector<8xf32>
    %44 = vector.multi_reduction <add>, %43, %cst_16 [1] : vector<8x16xf32> to vector<8xf32>
    %45 = vector.shape_cast %44 : vector<8xf32> to vector<8x1xf32>
    %46 = vector.extract_strided_slice %36 {offsets = [0, 48], sizes = [8, 16], strides = [1, 1]} : vector<8x64xf32> to vector<8x16xf32>
    %cst_17 = arith.constant dense<0.000000e+00> : vector<8xf32>
    %47 = vector.multi_reduction <add>, %46, %cst_17 [1] : vector<8x16xf32> to vector<8xf32>
    %48 = vector.shape_cast %47 : vector<8xf32> to vector<8x1xf32>
    %49 = vector.shape_cast %39 : vector<8x1xf32> to vector<8x1xf32>
    %50 = vector.broadcast %49 : vector<8x1xf32> to vector<8x16xf32>
    %51 = vector.shape_cast %42 : vector<8x1xf32> to vector<8x1xf32>
    %52 = vector.broadcast %51 : vector<8x1xf32> to vector<8x16xf32>
    %53 = vector.shape_cast %45 : vector<8x1xf32> to vector<8x1xf32>
    %54 = vector.broadcast %53 : vector<8x1xf32> to vector<8x16xf32>
    %55 = vector.shape_cast %48 : vector<8x1xf32> to vector<8x1xf32>
    %56 = vector.broadcast %55 : vector<8x1xf32> to vector<8x16xf32>
    %57 = tpu.concatenate %50, %52, %54, %56 in 1 : vector<8x16xf32>, vector<8x16xf32>, vector<8x16xf32>, vector<8x16xf32> -> vector<8x64xf32>
    %58 = tpu.reciprocal %57 {approx = true} : vector<8x64xf32> -> vector<8x64xf32>
    %59 = arith.mulf %36, %58 : vector<8x64xf32>
    %60 = arith.truncf %59 : vector<8x64xf32> to vector<8x64xbf16>
    %c0_18 = arith.constant 0 : index
    %c0_19 = arith.constant 0 : index
    %c0_20 = arith.constant 0 : index
    %61 = vector.load %arg5[%c0_18, %c0_19, %c0_20] : memref<1x64x128xbf16, #tpu.memory_space<vmem>>, vector<1x64x128xbf16>
    %62 = vector.shape_cast %61 : vector<1x64x128xbf16> to vector<64x128xbf16>
    %cst_21 = arith.constant dense<0.000000e+00> : vector<8x128xf32>
    %63 = tpu.matmul %60, %62, %cst_21 {dimension_numbers = #tpu.dot_dimension_numbers<[1], [0], [0], [1], [0, 0, 1, 1], [], []>} : vector<8x64xbf16>, vector<64x128xbf16>, vector<8x128xf32> -> vector<8x128xf32>
    %c0_22 = arith.constant 0 : index
    %c0_23 = arith.constant 0 : index
    %64 = vector.load %arg6[%c0_22, %c0_23] : memref<8x128xf32, #tpu.memory_space<vmem>>, vector<8x128xf32>
    tpu.vector_store %arg6[%c0_22, %c0_23], %63 {strides = array<i32>} : memref<8x128xf32, #tpu.memory_space<vmem>>, vector<8x128xf32>,
    return
  }
  func.func @transform_0(%arg0: i32, %arg1: i32) -> (i32, i32) {
    %c0_i32 = arith.constant 0 : i32
    %c0_i32_0 = arith.constant 0 : i32
    return %arg1, %c0_i32 : i32, i32
  }
  func.func @transform_1(%arg0: i32, %arg1: i32) -> (i32, i32, i32) {
    %c0_i32 = arith.constant 0 : i32
    %c0_i32_0 = arith.constant 0 : i32
    %c0_i32_1 = arith.constant 0 : i32
    return %arg0, %c0_i32, %c0_i32_0 : i32, i32, i32
  }
  func.func @transform_2(%arg0: i32, %arg1: i32) -> (i32, i32, i32) {
    %c0_i32 = arith.constant 0 : i32
    %c0_i32_0 = arith.constant 0 : i32
    %c0_i32_1 = arith.constant 0 : i32
    return %arg0, %c0_i32, %c0_i32_0 : i32, i32, i32
  }
  func.func @transform_3(%arg0: i32, %arg1: i32) -> (i32, i32, i32) {
    %c0_i32 = arith.constant 0 : i32
    %c0_i32_0 = arith.constant 0 : i32
    %c0_i32_1 = arith.constant 0 : i32
    return %arg0, %c0_i32, %c0_i32_0 : i32, i32, i32
  }
  func.func @transform_4(%arg0: i32, %arg1: i32) -> (i32, i32) {
    %c0_i32 = arith.constant 0 : i32
    return %arg1, %arg0 : i32, i32
  }
}

</mosaic_0001>

<llo_original>
// kernel: tpu_custom_call.1
$region0: #{tpu_custom_call.1}
  #allocation0 [shape = 'u32[]', space=smem, size = 0x4, offset = 0x4, fixed_abs, tag = 'smem constant byte address 0x4 - core index']
  #allocation1 [shape = 'u32[144,128]{1,0:T(1,128)}', space=vmem, size = 0x12000, scoped, tag = 'internal scratch']
  %s0 = inlined_call_operand.vmem [shape: f32[8,4], index: 0, kind: input, shape index: {}]
  %s1 = inlined_call_operand.vmem [shape: bf16[1,4,64], index: 1, kind: input, shape index: {}]
  %s2 = inlined_call_operand.hbm [shape: bf16[1,64,64], index: 2, kind: input, shape index: {}]
  %s3 = inlined_call_operand.hbm [shape: bf16[1,64,128], index: 3, kind: input, shape index: {}]
  %s4 = inlined_call_operand.hbm [shape: f32[8,128], index: 4, kind: output, shape index: {}]
  %s5 = sld [smem:[#allocation0]]
  $region34: #{tpu_custom_call.1} parent=0
    _
  %s7 = ssub.s32 1, %s5
  %s8 = scalar_select 0, %s7, %s5
  $region1: #{tpu_custom_call.1} parent=0
    #allocation2 [shape = 'u8[16384]{0}', space=vmem, size = 0x4000, scoped, tag = 'input window, operand 2, single buffered']
    #allocation3 [shape = 's32[1]{0}', space=sflag, size = 0x4, scoped, tag = 'scoped memory for tpu_custom_call.1']
    #allocation4 [shape = 's32[1]{0}', space=sflag, size = 0x4, scoped, tag = 'scoped memory for tpu_custom_call.1']
    #allocation5 [shape = 'u8[16384]{0}', space=vmem, size = 0x4000, scoped, tag = 'input window, operand 3, single buffered']
    #allocation6 [shape = 's32[1]{0}', space=sflag, size = 0x4, scoped, tag = 'scoped memory for tpu_custom_call.1']
    #allocation7 [shape = 'u8[4096]{0}', space=vmem, size = 0x1000, scoped, tag = 'output window, operand 0, single buffered']
    %9 = vsyncpa [#allocation3], 0
    %10 = vsyncpa [#allocation6], 0
    %11 = vsyncpa [#allocation4], 0
    // Predicated region
    $region2: #{tpu_custom_call.1} parent=1 // pred_check
      _
    $region3: #{tpu_custom_call.1} parent=1 // pred_check_branch
      %13 = sbr.rel (0) target = $region5
    $region4: #{tpu_custom_call.1} parent=1 // pred_region
      _
    $region5: #{tpu_custom_call.1} parent=1 // pred_fallthru
      _
    // Predicated region
    $region6: #{tpu_custom_call.1} parent=1 // pred_check
      _
    $region7: #{tpu_custom_call.1} parent=1 // pred_check_branch
      %15 = sbr.rel (0) target = $region9
    $region8: #{tpu_custom_call.1} parent=1 // pred_region
      _
    $region9: #{tpu_custom_call.1} parent=1 // pred_fallthru
      _
    // Predicated region
    $region10: #{tpu_custom_call.1} parent=1 // pred_check
      _
    $region11: #{tpu_custom_call.1} parent=1 // pred_check_branch
      %17 = sbr.rel (0) target = $region13
    $region12: #{tpu_custom_call.1} parent=1 // pred_region
      %s19 = ssub.s32 512, 512
      %20 = vsyncadd [#allocation3], %s19
      %s21 = sshll.u32 [#allocation2], 4
      %s22 = int_to_ptr.vmem [resolvable:$true] %s21
      %27 = dma.hbm_to_vmem [thread:$0]  %s2, 512, %s22, [#allocation3], 64, 64, 4
    $region13: #{tpu_custom_call.1} parent=1 // pred_fallthru
      _
    // Predicated region
    $region14: #{tpu_custom_call.1} parent=1 // pred_check
      _
    $region15: #{tpu_custom_call.1} parent=1 // pred_check_branch
      %29 = sbr.rel (0) target = $region17
    $region16: #{tpu_custom_call.1} parent=1 // pred_region
      %s31 = ssub.s32 512, 512
      %32 = vsyncadd [#allocation6], %s31
      %s33 = sshll.u32 [#allocation5], 4
      %s34 = int_to_ptr.vmem [resolvable:$true] %s33
      %39 = dma.hbm_to_vmem [thread:$0]  %s3, 512, %s34, [#allocation6], 64, 64, 4
    $region17: #{tpu_custom_call.1} parent=1 // pred_fallthru
      _
    // Predicated region
    $region18: #{tpu_custom_call.1} parent=1 // pred_check
      _
    $region19: #{tpu_custom_call.1} parent=1 // pred_check_branch
      %41 = sbr.rel (0) target = $region21
    $region20: #{tpu_custom_call.1} parent=1 // pred_region
      %42 = dma.done [#allocation3], 512
    $region21: #{tpu_custom_call.1} parent=1 // pred_fallthru
      _
    // Predicated region
    $region22: #{tpu_custom_call.1} parent=1 // pred_check
      _
    $region23: #{tpu_custom_call.1} parent=1 // pred_check_branch
      %44 = sbr.rel (0) target = $region25
    $region24: #{tpu_custom_call.1} parent=1 // pred_region
      %45 = dma.done [#allocation6], 512
    $region25: #{tpu_custom_call.1} parent=1 // pred_fallthru
      _
    %v47 = vld [vmem:[%s0] sm:$0xff]
    %v48 = vpack.c.bf16 %v47, %v47
    %v49 = vld [vmem:[%s1] sm:$0x3]
    %vm50 = vcmask 31744
    %v52 = vsel %vm50, %v48, 0
    %vm54 = vcmask 1041408
    %v56 = vsel %vm54, %v49, 0
    %58 = vmatprep.subr.bf16.mxu0 0
    %59 = vmatpush1.bf16.msra.mxu0 0
    %60 = vmatprep.subr.bf16.mxu0 0
    %61 = vmatpush1.bf16.msra.mxu0 0
    %62 = vmatprep.subr.bf16.mxu0 0
    %63 = vmatpush1.bf16.msra.mxu0 0
    %64 = vmatprep.subr.bf16.mxu0 0
    %65 = vmatpush1.bf16.msra.mxu0 0
    %66 = vmatprep.subr.bf16.mxu0 0
    %67 = vmatpush1.bf16.msra.mxu0 0
    %68 = vmatprep.subr.bf16.mxu0 0
    %69 = vmatpush1.bf16.msra.mxu0 0
    %70 = vmatprep.subr.bf16.mxu0 0
    %71 = vmatpush1.bf16.msra.mxu0 0
    %72 = vmatprep.subr.bf16.mxu0 0
    %73 = vmatpush1.bf16.msra.mxu0 %v56
    %74 = vmatprep.subr.bf16.mxu0 0
    %75 = vmatpush2.bf16.msra.mxu0 0
    %76 = vmatprep.subr.bf16.mxu0 0
    %77 = vmatpush2.bf16.msra.mxu0 0
    %78 = vmatprep.subr.bf16.mxu0 0
    %79 = vmatpush2.bf16.msra.mxu0 0
    %80 = vmatprep.subr.bf16.mxu0 0
    %81 = vmatpush2.bf16.msra.mxu0 0
    %82 = vmatprep.subr.bf16.mxu0 0
    %83 = vmatpush2.bf16.msra.mxu0 0
    %84 = vmatprep.subr.bf16.mxu0 0
    %85 = vmatpush2.bf16.msra.mxu0 0
    %86 = vmatprep.subr.bf16.mxu0 0
    %87 = vmatpush2.bf16.msra.mxu0 0
    %88 = vmatprep.subr.bf16.mxu0 0
    %89 = vmatpush2.bf16.msra.mxu0 0
    %90 = vmatprep.mubr.bf16.mxu0 0
    %91 = vmatmul.mubr.bf16.gmra.mxu0 %v52
    %v92 = vpop.f32.mrf.mxu0
    %v93 = vadd.f32 0.0, %v92
    %v94 = vpop.f32.mrf.mxu0
    %v95 = vpop.f32.mrf.mxu0
    %v96 = vpop.f32.mrf.mxu0
    %97 = vdwg.mxu0
    %vm98 = vcmp.ge.f32.partialorder %v93, 0.0
    %v99 = vmul.f32 %v93, 0.01
    %v100 = vsel %vm98, %v93, %v99
    %v101 = vpack.c.bf16 %v100, %v100
    %v102 = vld [vmem:[#allocation2] sm:$0xf]
    %v103 = vld [vmem:[#allocation2 + $0x4] sm:$0xf]
    %v104 = vld [vmem:[#allocation2 + $0x8] sm:$0xf]
    %v105 = vld [vmem:[#allocation2 + $0xc] sm:$0xf]
    %v106 = vld [vmem:[#allocation2 + $0x10] sm:$0xf]
    %v107 = vld [vmem:[#allocation2 + $0x14] sm:$0xf]
    %v108 = vld [vmem:[#allocation2 + $0x18] sm:$0xf]
    %v109 = vld [vmem:[#allocation2 + $0x1c] sm:$0xf]
    %v118 = vunpack.c.l.b16 %v102
    %v119 = vunpack.c.l.b16 %v103
    %v120 = vunpack.c.l.b16 %v104
    %v121 = vunpack.c.l.b16 %v105
    %v122 = vunpack.c.l.b16 %v106
    %v123 = vunpack.c.l.b16 %v107
    %v124 = vunpack.c.l.b16 %v108
    %v125 = vunpack.c.l.b16 %v109
    %v126 = vpack.c.b16 %v119, %v118
    %v127 = vpack.c.b16 %v121, %v120
    %v128 = vpack.c.b16 %v123, %v122
    %v129 = vpack.c.b16 %v125, %v124
    %vm134 = vcmask 523264
    %v136 = vsel %vm134, %v101, 0
    %138 = vmatprep.subr.bf16.mxu0 0
    %139 = vmatpush1.bf16.msra.mxu0 0
    %140 = vmatprep.subr.bf16.mxu0 0
    %141 = vmatpush1.bf16.msra.mxu0 0
    %142 = vmatprep.subr.bf16.mxu0 0
    %143 = vmatpush1.bf16.msra.mxu0 0
    %144 = vmatprep.subr.bf16.mxu0 0
    %145 = vmatpush1.bf16.msra.mxu0 0
    %146 = vmatprep.subr.bf16.mxu0 0
    %147 = vmatpush1.bf16.msra.mxu0 %v129
    %148 = vmatprep.subr.bf16.mxu0 0
    %149 = vmatpush1.bf16.msra.mxu0 %v128
    %150 = vmatprep.subr.bf16.mxu0 0
    %151 = vmatpush1.bf16.msra.mxu0 %v127
    %152 = vmatprep.subr.bf16.mxu0 0
    %153 = vmatpush1.bf16.msra.mxu0 %v126
    %154 = vmatprep.subr.bf16.mxu0 0
    %155 = vmatpush2.bf16.msra.mxu0 0
    %156 = vmatprep.subr.bf16.mxu0 0
    %157 = vmatpush2.bf16.msra.mxu0 0
    %158 = vmatprep.subr.bf16.mxu0 0
    %159 = vmatpush2.bf16.msra.mxu0 0
    %160 = vmatprep.subr.bf16.mxu0 0
    %161 = vmatpush2.bf16.msra.mxu0 0
    %162 = vmatprep.subr.bf16.mxu0 0
    %163 = vmatpush2.bf16.msra.mxu0 0
    %164 = vmatprep.subr.bf16.mxu0 0
    %165 = vmatpush2.bf16.msra.mxu0 0
    %166 = vmatprep.subr.bf16.mxu0 0
    %167 = vmatpush2.bf16.msra.mxu0 0
    %168 = vmatprep.subr.bf16.mxu0 0
    %169 = vmatpush2.bf16.msra.mxu0 0
    %170 = vmatprep.mubr.bf16.mxu0 0
    %171 = vmatmul.mubr.bf16.gmra.mxu0 %v136
    %v172 = vpop.f32.mrf.mxu0
    %v173 = vadd.f32 0.0, %v172
    %v174 = vpop.f32.mrf.mxu0
    %v175 = vpop.f32.mrf.mxu0
    %v176 = vpop.f32.mrf.mxu0
    %177 = vdwg.mxu0
    %vm178 = vcmask 130048
    %v179 = vsel %vm178, %v173, -inf
    %180 = vmax.xlane.f32.xlu0 %v179
    %v181 = vpop.xlane.xlu0 %180
    %vm182 = vcmask 261248
    %v183 = vsel %vm182, %v173, -inf
    %184 = vmax.xlane.f32.xlu0 %v183
    %v185 = vpop.xlane.xlu0 %184
    %vm186 = vcmask 392448
    %v187 = vsel %vm186, %v173, -inf
    %188 = vmax.xlane.f32.xlu0 %v187
    %v189 = vpop.xlane.xlu0 %188
    %vm190 = vcmask 523648
    %v191 = vsel %vm190, %v173, -inf
    %192 = vmax.xlane.f32.xlu0 %v191
    %v193 = vpop.xlane.xlu0 %192
    %v194 = vsel %vm178, %v181, %v185
    %vm195 = vcmask 261120
    %v196 = vsel %vm195, %v194, %v189
    %vm197 = vcmask 392192
    %v198 = vsel %vm197, %v196, %v193
    %v199 = vsub.f32 %v173, %v198
    %v200 = vmul.f32 %v199, 1.442695
    %v201 = vpow.pop %v200
    %v202 = vsel %vm178, %v201, 0.0
    %203 = vadd.xlane.f32.xlu0 %v202
    %v204 = vpop.xlane.xlu0 %203
    %206 = vrot.lane.b32.xlu0 %v201, 112
    %v207 = vpop.permute.xlu0 %206
    %v209 = vsel %vm178, %v207, 0.0
    %210 = vadd.xlane.f32.xlu0 %v209
    %v211 = vpop.xlane.xlu0 %210
    %212 = vrot.lane.b32.xlu0 %v201, 96
    %v213 = vpop.permute.xlu0 %212
    %v215 = vsel %vm178, %v213, 0.0
    %216 = vadd.xlane.f32.xlu0 %v215
    %v217 = vpop.xlane.xlu0 %216
    %218 = vrot.lane.b32.xlu0 %v201, 80
    %v219 = vpop.permute.xlu0 %218
    %v221 = vsel %vm178, %v219, 0.0
    %222 = vadd.xlane.f32.xlu0 %v221
    %v223 = vpop.xlane.xlu0 %222
    %v224 = vsel %vm178, %v204, %v211
    %v225 = vsel %vm195, %v224, %v217
    %v226 = vsel %vm197, %v225, %v223
    %v227 = vrcp.pop %v226
    %v228 = vmul.f32 %v201, %v227
    %v229 = vpack.c.bf16 %v228, %v228
    %v230 = vld [vmem:[#allocation5] sm:$0xf]
    %v231 = vld [vmem:[#allocation5 + $0x4] sm:$0xf]
    %v232 = vld [vmem:[#allocation5 + $0x8] sm:$0xf]
    %v233 = vld [vmem:[#allocation5 + $0xc] sm:$0xf]
    %v234 = vld [vmem:[#allocation5 + $0x10] sm:$0xf]
    %v235 = vld [vmem:[#allocation5 + $0x14] sm:$0xf]
    %v236 = vld [vmem:[#allocation5 + $0x18] sm:$0xf]
    %v237 = vld [vmem:[#allocation5 + $0x1c] sm:$0xf]
    %v246 = vunpack.c.l.b16 %v230
    %v247 = vunpack.c.l.b16 %v231
    %v248 = vunpack.c.l.b16 %v232
    %v249 = vunpack.c.l.b16 %v233
    %v250 = vunpack.c.l.b16 %v234
    %v251 = vunpack.c.l.b16 %v235
    %v252 = vunpack.c.l.b16 %v236
    %v253 = vunpack.c.l.b16 %v237
    %v254 = vpack.c.b16 %v247, %v246
    %v255 = vpack.c.b16 %v249, %v248
    %v256 = vpack.c.b16 %v251, %v250
    %v257 = vpack.c.b16 %v253, %v252
    %v263 = vsel %vm134, %v229, 0
    %265 = vmatprep.subr.bf16.mxu0 0
    %266 = vmatpush1.bf16.msra.mxu0 0
    %267 = vmatprep.subr.bf16.mxu0 0
    %268 = vmatpush1.bf16.msra.mxu0 0
    %269 = vmatprep.subr.bf16.mxu0 0
    %270 = vmatpush1.bf16.msra.mxu0 0
    %271 = vmatprep.subr.bf16.mxu0 0
    %272 = vmatpush1.bf16.msra.mxu0 0
    %273 = vmatprep.subr.bf16.mxu0 0
    %274 = vmatpush1.bf16.msra.mxu0 %v257
    %275 = vmatprep.subr.bf16.mxu0 0
    %276 = vmatpush1.bf16.msra.mxu0 %v256
    %277 = vmatprep.subr.bf16.mxu0 0
    %278 = vmatpush1.bf16.msra.mxu0 %v255
    %279 = vmatprep.subr.bf16.mxu0 0
    %280 = vmatpush1.bf16.msra.mxu0 %v254
    %281 = vmatprep.subr.bf16.mxu0 0
    %282 = vmatpush2.bf16.msra.mxu0 0
    %283 = vmatprep.subr.bf16.mxu0 0
    %284 = vmatpush2.bf16.msra.mxu0 0
    %285 = vmatprep.subr.bf16.mxu0 0
    %286 = vmatpush2.bf16.msra.mxu0 0
    %287 = vmatprep.subr.bf16.mxu0 0
    %288 = vmatpush2.bf16.msra.mxu0 0
    %289 = vmatprep.subr.bf16.mxu0 0
    %290 = vmatpush2.bf16.msra.mxu0 0
    %291 = vmatprep.subr.bf16.mxu0 0
    %292 = vmatpush2.bf16.msra.mxu0 0
    %293 = vmatprep.subr.bf16.mxu0 0
    %294 = vmatpush2.bf16.msra.mxu0 0
    %295 = vmatprep.subr.bf16.mxu0 0
    %296 = vmatpush2.bf16.msra.mxu0 0
    %297 = vmatprep.mubr.bf16.mxu0 0
    %298 = vmatmul.mubr.bf16.gmra.mxu0 %v263
    %v299 = vpop.f32.mrf.mxu0
    %v300 = vadd.f32 0.0, %v299
    %v301 = vpop.f32.mrf.mxu0
    %v302 = vpop.f32.mrf.mxu0
    %v303 = vpop.f32.mrf.mxu0
    %304 = vdwg.mxu0
    %305 = vst [vmem:[#allocation7] sm:$0xff] %v300
    // Predicated region
    $region26: #{tpu_custom_call.1} parent=1 // pred_check
      _
    $region27: #{tpu_custom_call.1} parent=1 // pred_check_branch
      %307 = sbr.rel (0) target = $region29
    $region28: #{tpu_custom_call.1} parent=1 // pred_region
      %s309 = ssub.s32 128, 128
      %310 = vsyncadd [#allocation4], %s309
      %s312 = sshll.u32 [#allocation7], 4
      %s313 = int_to_ptr.vmem [resolvable:$true] %s312
      %315 = dma.vmem_to_hbm [thread:$0]  %s313, 128, %s4, [#allocation4]
    $region29: #{tpu_custom_call.1} parent=1 // pred_fallthru
      _
    // Predicated region
    $region30: #{tpu_custom_call.1} parent=1 // pred_check
      _
    $region31: #{tpu_custom_call.1} parent=1 // pred_check_branch
      %317 = sbr.rel (0) target = $region33
    $region32: #{tpu_custom_call.1} parent=1 // pred_region
      %318 = dma.done [#allocation4], 128
    $region33: #{tpu_custom_call.1} parent=1 // pred_fallthru
      _
    %319 = vsyncpa [#allocation3], 1
    %320 = vsyncpa [#allocation6], 1
    %321 = vsyncpa [#allocation4], 1

</llo_original>
